<compile_context>
chip_gen: v6e
topology: v6e:2x2x1
jax: 0.10.0
libtpu: 0.0.40
codegen_flags: <defaults>
</compile_context>

<pallas_src>
import jax
import jax.numpy as jnp
from jax.experimental import pallas as pl
from jax.experimental.pallas import tpu as pltpu

_LANES = 128      # lane width
_SUB = 8          # f32 sublane count
_ROW_TILE = 1024  # rows per grid step: 1024*128*4B = 512 KiB per f32 input tile


def _sublane_granularity(dtype):
    # f32 -> 8, bf16 -> 16, int8/fp8 -> 32 (packed sublanes).
    return max(_SUB, 32 // max(jnp.dtype(dtype).itemsize, 1))


def js_div_loss(p, q, reduction="mean", *, row_tile=_ROW_TILE):
    """Pallas implementation of JSDivLoss.forward(p, q)."""
    assert p.shape == q.shape, "p and q must have the same shape"
    n_elem = p.size
    assert n_elem > 0

    # ---- host-side layout: lane-dense [rows, 128] view ----------------------
    sub = max(_sublane_granularity(p.dtype), _sublane_granularity(q.dtype))
    chunk = sub * _LANES
    padded = ((n_elem + chunk - 1) // chunk) * chunk

    p_flat = jnp.ravel(p)
    q_flat = jnp.ravel(q)
    if padded != n_elem:
        # Zero pads contribute exactly 0 (m == 0 -> elem = 0), so no extra
        # in-kernel masking is needed for them.
        p_flat = jnp.pad(p_flat, (0, padded - n_elem))
        q_flat = jnp.pad(q_flat, (0, padded - n_elem))
    rows = padded // _LANES
    p2d = p_flat.reshape(rows, _LANES)
    q2d = q_flat.reshape(rows, _LANES)

    # ---- grid: (core split, row blocks) --------------------------------------
    tm = min(int(row_tile), rows)
    tm = max(sub, (tm // sub) * sub)          # keep tm a sublane multiple
    nb = pl.cdiv(rows, tm)                    # row blocks (last may be partial)

    # Two-way split across v7x TensorCores only when it costs (almost) nothing
    # on single-TC chips: even block count -> exact split; large odd count ->
    # at most one wasted (fully masked) step out of nb.
    if nb >= 2 and nb % 2 == 0:
        n_parts = 2
    elif nb >= 9:
        n_parts = 2
    else:
        n_parts = 1
    bpp = pl.cdiv(nb, n_parts)                # row blocks per part

    # Static: does any grid step touch rows >= `rows`?  (partial edge block or
    # clamped trailing step).  If not, skip the per-block row mask entirely.
    needs_mask = (rows % tm != 0) or (nb % n_parts != 0)

    def in_map(c, i):
        # Clamp so a part's trailing (fully masked) steps re-read the last
        # valid block instead of indexing out of range.
        return (jnp.minimum(c * bpp + i, nb - 1), 0)

    def kernel(p_ref, q_ref, out_ref):
        c = pl.program_id(0)
        i = pl.program_id(1)

        @pl.when(i == 0)
        def _():
            out_ref[...] = jnp.zeros_like(out_ref)

        pv = p_ref[...].astype(jnp.float32)   # loads keep input dtype (bf16 ok)
        qv = q_ref[...].astype(jnp.float32)   # math always f32 (v5e-safe)
        m = 0.5 * (pv + qv)
        # Fused per-element JS contribution: xlogy(m,m) - m*m, xlogy(0,0) := 0.
        elem = jnp.where(m == 0.0, 0.0, m * (jnp.log(m) - m))

        if needs_mask:
            # Mask rows past the real row count (partial edge block and the
            # clamped/re-read trailing steps).  Uses the UNclamped block index.
            row0 = (c * bpp + i) * tm
            rid = row0 + jax.lax.broadcasted_iota(jnp.int32, (tm, 1), 0)
            elem = jnp.where(rid < rows, elem, 0.0)

        # VPU-only per-block reduction into the resident (1, 8, 128) output
        # block; the single cross-lane/sublane reduce happens once, outside.
        out_ref[...] += elem.reshape(tm // _SUB, _SUB, _LANES).sum(
            axis=0, keepdims=True)

    in_bytes = rows * _LANES * (jnp.dtype(p.dtype).itemsize
                                + jnp.dtype(q.dtype).itemsize)
    partials = pl.pallas_call(
        kernel,
        out_shape=jax.ShapeDtypeStruct((n_parts, _SUB, _LANES), jnp.float32),
        grid_spec=pltpu.PrefetchScalarGridSpec(
            num_scalar_prefetch=0,
            grid=(n_parts, bpp),
            in_specs=[pl.BlockSpec((tm, _LANES), in_map),
                      pl.BlockSpec((tm, _LANES), in_map)],
            out_specs=pl.BlockSpec((1, _SUB, _LANES), lambda c, i: (c, 0, 0)),
        ),
        compiler_params=pltpu.CompilerParams(
            dimension_semantics=("parallel", "arbitrary")),
        cost_estimate=pl.CostEstimate(
            flops=5 * n_elem,
            transcendentals=n_elem,
            bytes_accessed=in_bytes + n_parts * _SUB * _LANES * 4),
    )(p2d, q2d)

    total = jnp.sum(partials)   # tiny (n_parts*8*128) final reduce, XLA-side

    if reduction == "mean":
        return total / jnp.float32(n_elem)
    elif reduction == "sum":
        return total
    else:
        # TODO(synk): reduction='none' / 'batchmean' not implemented.
        raise NotImplementedError(f"reduction={reduction!r}")


def _js_div_loss_ref(p, q, reduction="mean"):
    """Pure-JAX reference (unfused form) for correctness checking."""
    p = p.astype(jnp.float32)
    q = q.astype(jnp.float32)
    m = 0.5 * (p + q)
    xlogm = jnp.where(m == 0.0, 0.0, m * jnp.log(m))
    kl_p = xlogm - m * p
    kl_q = xlogm - m * q
    red = jnp.mean if reduction == "mean" else jnp.sum
    return 0.5 * (red(kl_p) + red(kl_q))


if __name__ == "__main__":
    key = jax.random.PRNGKey(0)
    keys = jax.random.split(key, 8)

    def probs(k, shape, dtype=jnp.float32):
        x = jax.nn.softmax(jax.random.normal(k, shape, jnp.float32), axis=1)
        return x.astype(dtype)

    # 1) Primary small NCHW test: single block, single part.
    p = probs(keys[0], (2, 4, 16, 16))
    q = probs(keys[1], (2, 4, 16, 16))
    out = jax.block_until_ready(js_div_loss(p, q, reduction="mean"))
    ref = _js_div_loss_ref(p, q, reduction="mean")
    assert jnp.allclose(out, ref, rtol=1e-5, atol=1e-6), (out, ref)

    # 2) 1280 rows -> 2 blocks of 1024, 2-way core split, partial last block
    #    exercises the in-kernel row masking.
    p2 = probs(keys[2], (2, 8, 128, 80))
    q2 = probs(keys[3], (2, 8, 128, 80))
    out2 = jax.block_until_ready(js_div_loss(p2, q2, reduction="mean"))
    ref2 = _js_div_loss_ref(p2, q2, reduction="mean")
    assert jnp.allclose(out2, ref2, rtol=1e-4, atol=1e-6), (out2, ref2)

    # 3) Odd block count with 2-way split (tiny row_tile): exercises the
    #    clamped, fully-masked trailing grid step.
    p3 = probs(keys[4], (2, 4, 32, 36))   # 9216 elems -> 72 rows -> 9 blocks @ 8
    q3 = probs(keys[5], (2, 4, 32, 36))
    out3 = jax.block_until_ready(js_div_loss(p3, q3, row_tile=8))
    ref3 = _js_div_loss_ref(p3, q3)
    assert jnp.allclose(out3, ref3, rtol=1e-5, atol=1e-6), (out3, ref3)

    # 4) Irregular element count -> zero-pad path (pads contribute exactly 0).
    p4 = probs(keys[6], (3, 5, 7, 11))
    q4 = probs(keys[7], (3, 5, 7, 11))
    out4 = jax.block_until_ready(js_div_loss(p4, q4))
    ref4 = _js_div_loss_ref(p4, q4)
    assert jnp.allclose(out4, ref4, rtol=1e-5, atol=1e-6), (out4, ref4)

    # 5) bf16 inputs go straight into the kernel (half the HBM traffic); math f32.
    out5 = jax.block_until_ready(
        js_div_loss(p.astype(jnp.bfloat16), q.astype(jnp.bfloat16)))
    ref5 = _js_div_loss_ref(p.astype(jnp.bfloat16), q.astype(jnp.bfloat16))
    assert jnp.allclose(out5, ref5, rtol=1e-4, atol=1e-6), (out5, ref5)

    # 6) 'sum' reduction path.
    out6 = jax.block_until_ready(js_div_loss(p, q, reduction="sum"))
    ref6 = _js_div_loss_ref(p, q, reduction="sum")
    assert jnp.allclose(out6, ref6, rtol=1e-5, atol=1e-5), (out6, ref6)

    print("KERNEL_OK")
</pallas_src>

<mosaic_0001>
module attributes {stable_mosaic.version = 11 : i64} {
  func.func @kernel(%arg0: i32, %arg1: i32, %arg2: memref<16x128xf32, #tpu.memory_space<vmem>>, %arg3: memref<16x128xf32, #tpu.memory_space<vmem>>, %arg4: memref<1x8x128xf32, #tpu.memory_space<vmem>>) attributes {dimension_semantics = [#tpu.dimension_semantics<parallel>, #tpu.dimension_semantics<arbitrary>], iteration_bounds = array<i64: 1, 1>, scalar_prefetch = 0 : i64, scratch_operands = 0 : i64, tpu.core_type = #tpu.core_type<tc>, window_params = [{transform_indices = @transform_0, window_bounds = array<i64: 16, 128>}, {transform_indices = @transform_1, window_bounds = array<i64: 16, 128>}, {transform_indices = @transform_2, window_bounds = array<i64: 1, 8, 128>}]} {
    %c0_i32 = arith.constant 0 : i32
    %0 = arith.cmpi eq, %arg1, %c0_i32 : i32
    %1 = arith.extui %0 : i1 to i32
    %c0_i32_0 = arith.constant 0 : i32
    %2 = arith.cmpi ne, %1, %c0_i32_0 : i32
    scf.if %2 {
      %cst_13 = arith.constant 0.000000e+00 : f32
      %21 = vector.broadcast %cst_13 : f32 to vector<1x8x128xf32>
      %c0_14 = arith.constant 0 : index
      %c0_15 = arith.constant 0 : index
      %c0_16 = arith.constant 0 : index
      %22 = vector.load %arg4[%c0_14, %c0_15, %c0_16] : memref<1x8x128xf32, #tpu.memory_space<vmem>>, vector<1x8x128xf32>
      tpu.vector_store %arg4[%c0_14, %c0_15, %c0_16], %21 {strides = array<i32>} : memref<1x8x128xf32, #tpu.memory_space<vmem>>, vector<1x8x128xf32>,
    } else {
    }
    %c0 = arith.constant 0 : index
    %c0_1 = arith.constant 0 : index
    %3 = vector.load %arg2[%c0, %c0_1] : memref<16x128xf32, #tpu.memory_space<vmem>>, vector<16x128xf32>
    %c0_2 = arith.constant 0 : index
    %c0_3 = arith.constant 0 : index
    %4 = vector.load %arg3[%c0_2, %c0_3] : memref<16x128xf32, #tpu.memory_space<vmem>>, vector<16x128xf32>
    %5 = arith.addf %3, %4 : vector<16x128xf32>
    %cst = arith.constant 5.000000e-01 : f32
    %6 = vector.broadcast %cst : f32 to vector<16x128xf32>
    %7 = arith.mulf %6, %5 : vector<16x128xf32>
    %cst_4 = arith.constant 0.000000e+00 : f32
    %8 = vector.broadcast %cst_4 : f32 to vector<16x128xf32>
    %9 = arith.cmpf oeq, %7, %8 : vector<16x128xf32>
    %10 = math.log %7 : vector<16x128xf32>
    %11 = arith.subf %10, %7 : vector<16x128xf32>
    %12 = arith.mulf %7, %11 : vector<16x128xf32>
    %cst_5 = arith.constant 0.000000e+00 : f32
    %13 = vector.broadcast %cst_5 : f32 to vector<16x128xf32>
    %14 = arith.select %9, %13, %12 : vector<16x128xi1>, vector<16x128xf32>
    %c0_6 = arith.constant 0 : index
    %c0_7 = arith.constant 0 : index
    %c0_8 = arith.constant 0 : index
    %15 = vector.load %arg4[%c0_6, %c0_7, %c0_8] : memref<1x8x128xf32, #tpu.memory_space<vmem>>, vector<1x8x128xf32>
    %16 = vector.shape_cast %14 : vector<16x128xf32> to vector<2x8x128xf32>
    %cst_9 = arith.constant dense<0.000000e+00> : vector<8x128xf32>
    %17 = vector.multi_reduction <add>, %16, %cst_9 [0] : vector<2x8x128xf32> to vector<8x128xf32>
    %18 = vector.shape_cast %17 : vector<8x128xf32> to vector<1x8x128xf32>
    %19 = arith.addf %15, %18 : vector<1x8x128xf32>
    %c0_10 = arith.constant 0 : index
    %c0_11 = arith.constant 0 : index
    %c0_12 = arith.constant 0 : index
    %20 = vector.load %arg4[%c0_10, %c0_11, %c0_12] : memref<1x8x128xf32, #tpu.memory_space<vmem>>, vector<1x8x128xf32>
    tpu.vector_store %arg4[%c0_10, %c0_11, %c0_12], %19 {strides = array<i32>} : memref<1x8x128xf32, #tpu.memory_space<vmem>>, vector<1x8x128xf32>,
    return
  }
  func.func @transform_0(%arg0: i32, %arg1: i32) -> (i32, i32) {
    %c1_i32 = arith.constant 1 : i32
    %0 = arith.muli %arg0, %c1_i32 : i32
    %1 = arith.addi %0, %arg1 : i32
    %c0_i32 = arith.constant 0 : i32
    %2 = arith.minsi %1, %c0_i32 : i32
    %c0_i32_0 = arith.constant 0 : i32
    %c0_i32_1 = arith.constant 0 : i32
    return %2, %c0_i32_0 : i32, i32
  }
  func.func @transform_1(%arg0: i32, %arg1: i32) -> (i32, i32) {
    %c1_i32 = arith.constant 1 : i32
    %0 = arith.muli %arg0, %c1_i32 : i32
    %1 = arith.addi %0, %arg1 : i32
    %c0_i32 = arith.constant 0 : i32
    %2 = arith.minsi %1, %c0_i32 : i32
    %c0_i32_0 = arith.constant 0 : i32
    %c0_i32_1 = arith.constant 0 : i32
    return %2, %c0_i32_0 : i32, i32
  }
  func.func @transform_2(%arg0: i32, %arg1: i32) -> (i32, i32, i32) {
    %c0_i32 = arith.constant 0 : i32
    %c0_i32_0 = arith.constant 0 : i32
    %c0_i32_1 = arith.constant 0 : i32
    return %arg0, %c0_i32, %c0_i32_0 : i32, i32, i32
  }
}

</mosaic_0001>

<llo_original>
// kernel: tpu_custom_call.1
$region0: #{tpu_custom_call.1}
  #allocation0 [shape = 'u32[]', space=smem, size = 0x4, offset = 0x4, fixed_abs, tag = 'smem constant byte address 0x4 - core index']
  #allocation1 [shape = 'u32[144,128]{1,0:T(1,128)}', space=vmem, size = 0x12000, scoped, tag = 'internal scratch']
  %s0 = inlined_call_operand.hbm [shape: f32[16,128], index: 0, kind: input, shape index: {}]
  %s1 = inlined_call_operand.hbm [shape: f32[16,128], index: 1, kind: input, shape index: {}]
  %s2 = inlined_call_operand.hbm [shape: f32[1,8,128], index: 2, kind: output, shape index: {}]
  %s3 = sld [smem:[#allocation0]]
  $region30: #{tpu_custom_call.1} parent=0
    _
  %s5 = ssub.s32 1, %s3
  %s6 = scalar_select 0, %s5, %s3
  $region1: #{tpu_custom_call.1} parent=0
    #allocation2 [shape = 'u8[8192]{0}', space=vmem, size = 0x2000, scoped, tag = 'input window, operand 0, single buffered']
    #allocation3 [shape = 's32[1]{0}', space=sflag, size = 0x4, scoped, tag = 'scoped memory for tpu_custom_call.1']
    #allocation4 [shape = 's32[1]{0}', space=sflag, size = 0x4, scoped, tag = 'scoped memory for tpu_custom_call.1']
    #allocation5 [shape = 'u8[8192]{0}', space=vmem, size = 0x2000, scoped, tag = 'input window, operand 1, single buffered']
    #allocation6 [shape = 's32[1]{0}', space=sflag, size = 0x4, scoped, tag = 'scoped memory for tpu_custom_call.1']
    #allocation7 [shape = 'u8[4096]{0}', space=vmem, size = 0x1000, scoped, tag = 'output window, operand 0, single buffered']
    %7 = vsyncpa [#allocation3], 0
    %8 = vsyncpa [#allocation6], 0
    %9 = vsyncpa [#allocation4], 0
    // Predicated region
    $region2: #{tpu_custom_call.1} parent=1 // pred_check
      _
    $region3: #{tpu_custom_call.1} parent=1 // pred_check_branch
      %11 = sbr.rel (0) target = $region5
    $region4: #{tpu_custom_call.1} parent=1 // pred_region
      %s12 = sadd.s32 0, 0
      %p13 = scmp.lt.s32.totalorder %s12, 0
      %s14 = scalar_select %p13, %s12, 0
      %s15 = smul.u32 2, %s14
      %s17 = ssub.s32 256, 256
      %18 = vsyncadd [#allocation3], %s17
      %s19 = smul.addr %s15, 128
      %s20 = scalar_lea.hbm %s0, %s19
      %s21 = sshll.u32 [#allocation2], 4
      %s22 = int_to_ptr.vmem [resolvable:$true] %s21
      %27 = dma.hbm_to_vmem [thread:$0]  %s20, 256, %s22, [#allocation3], 128, 128, 8
    $region5: #{tpu_custom_call.1} parent=1 // pred_fallthru
      _
    // Predicated region
    $region6: #{tpu_custom_call.1} parent=1 // pred_check
      _
    $region7: #{tpu_custom_call.1} parent=1 // pred_check_branch
      %29 = sbr.rel (0) target = $region9
    $region8: #{tpu_custom_call.1} parent=1 // pred_region
      %s30 = sadd.s32 0, 0
      %p31 = scmp.lt.s32.totalorder %s30, 0
      %s32 = scalar_select %p31, %s30, 0
      %s33 = smul.u32 2, %s32
      %s35 = ssub.s32 256, 256
      %36 = vsyncadd [#allocation6], %s35
      %s37 = smul.addr %s33, 128
      %s38 = scalar_lea.hbm %s1, %s37
      %s39 = sshll.u32 [#allocation5], 4
      %s40 = int_to_ptr.vmem [resolvable:$true] %s39
      %45 = dma.hbm_to_vmem [thread:$0]  %s38, 256, %s40, [#allocation6], 128, 128, 8
    $region9: #{tpu_custom_call.1} parent=1 // pred_fallthru
      _
    // Predicated region
    $region10: #{tpu_custom_call.1} parent=1 // pred_check
      _
    $region11: #{tpu_custom_call.1} parent=1 // pred_check_branch
      %47 = sbr.rel (0) target = $region13
    $region12: #{tpu_custom_call.1} parent=1 // pred_region
      %48 = dma.done [#allocation3], 256
    $region13: #{tpu_custom_call.1} parent=1 // pred_fallthru
      _
    // Predicated region
    $region14: #{tpu_custom_call.1} parent=1 // pred_check
      _
    $region15: #{tpu_custom_call.1} parent=1 // pred_check_branch
      %50 = sbr.rel (0) target = $region17
    $region16: #{tpu_custom_call.1} parent=1 // pred_region
      %51 = dma.done [#allocation6], 256
    $region17: #{tpu_custom_call.1} parent=1 // pred_fallthru
      _
    %s52 = sadd.s32 0, 0
    %p53 = scmp.lt.s32.totalorder %s52, 0
    %s54 = scalar_select %p53, %s52, 0
    %s55 = smul.u32 2, %s54
    %s56 = sadd.s32 0, 0
    %p57 = scmp.lt.s32.totalorder %s56, 0
    %s58 = scalar_select %p57, %s56, 0
    %s59 = smul.u32 2, %s58
    %p60 = scmp.eq.s32.totalorder 0, 0
    // Predicated region
    $region18: #{tpu_custom_call.1} parent=1 // pred_check
      %p61 = pneg %p60
    $region19: #{tpu_custom_call.1} parent=1 // pred_check_branch
      %63 = sbr.rel (%p61) target = $region21
    $region20: #{tpu_custom_call.1} parent=1 // pred_region
      %64 = vst [vmem:[#allocation7] sm:$0xff] 0.0
    $region21: #{tpu_custom_call.1} parent=1 // pred_fallthru
      _
    %v65 = vld [vmem:[#allocation2] sm:$0xff]
    %v66 = vld [vmem:[#allocation2 + $0x8] sm:$0xff]
    %v67 = vld [vmem:[#allocation5] sm:$0xff]
    %v68 = vld [vmem:[#allocation5 + $0x8] sm:$0xff]
    %v69 = vadd.f32 %v65, %v67
    %v70 = vadd.f32 %v66, %v68
    %v71 = vmul.f32 %v69, 0.5
    %v72 = vmul.f32 %v70, 0.5
    %vm73 = vcmp.eq.f32.partialorder %v71, 0.0
    %vm74 = vcmp.eq.f32.partialorder %v72, 0.0
    %v75 = vlog2.pop %v71
    %v76 = vmul.f32 %v75, 0.6931472
    %v77 = vlog2.pop %v72
    %v78 = vmul.f32 %v77, 0.6931472
    %v79 = vsub.f32 %v76, %v71
    %v80 = vsub.f32 %v78, %v72
    %v81 = vmul.f32 %v71, %v79
    %v82 = vmul.f32 %v72, %v80
    %v83 = vsel %vm73, 0.0, %v81
    %v84 = vsel %vm74, 0.0, %v82
    %v85 = vld [vmem:[#allocation7] sm:$0xff]
    %v86 = vadd.f32 %v83, %v84
    %v87 = vadd.f32 %v85, %v86
    %88 = vst [vmem:[#allocation7] sm:$0xff] %v87
    // Predicated region
    $region22: #{tpu_custom_call.1} parent=1 // pred_check
      _
    $region23: #{tpu_custom_call.1} parent=1 // pred_check_branch
      %90 = sbr.rel (0) target = $region25
    $region24: #{tpu_custom_call.1} parent=1 // pred_region
      %s92 = ssub.s32 128, 128
      %93 = vsyncadd [#allocation4], %s92
      %s95 = sshll.u32 [#allocation7], 4
      %s96 = int_to_ptr.vmem [resolvable:$true] %s95
      %98 = dma.vmem_to_hbm [thread:$0]  %s96, 128, %s2, [#allocation4]
    $region25: #{tpu_custom_call.1} parent=1 // pred_fallthru
      _
    // Predicated region
    $region26: #{tpu_custom_call.1} parent=1 // pred_check
      _
    $region27: #{tpu_custom_call.1} parent=1 // pred_check_branch
      %100 = sbr.rel (0) target = $region29
    $region28: #{tpu_custom_call.1} parent=1 // pred_region
      %101 = dma.done [#allocation4], 128
    $region29: #{tpu_custom_call.1} parent=1 // pred_fallthru
      _
    %102 = vsyncpa [#allocation3], 1
    %103 = vsyncpa [#allocation6], 1
    %104 = vsyncpa [#allocation4], 1

</llo_original>
